<compile_context>
chip_gen: v6e
topology: v6e:2x2x1
jax: 0.10.0
libtpu: 0.0.40
codegen_flags: <defaults>
</compile_context>

<pallas_src>
import math
import functools

import jax
import jax.numpy as jnp
from jax import lax
from jax.experimental import pallas as pl
from jax.experimental.pallas import tpu as pltpu


NEG_INF = -1e30


def _round_up(x, m):
    return ((x + m - 1) // m) * m


def _pick_tile(total, target):
    """Largest multiple of 128 that divides `total` (a multiple of 128) and is <= target."""
    t = max(128, min(target, total))
    t = (t // 128) * 128
    while total % t:
        t -= 128
    return t


# ---------------------------------------------------------------------------
# Linear kernel (feature-major):  y[C_out, N] = W[C_out, C_in] @ x[C_in, N] + b
# ---------------------------------------------------------------------------
def _linear_kernel(w_ref, x_ref, b_ref, o_ref):
    y = jnp.dot(w_ref[...], x_ref[...].astype(jnp.bfloat16),
                preferred_element_type=jnp.float32) + b_ref[...]
    o_ref[...] = y.astype(o_ref.dtype)


def linear_pallas(x_fm, w_bf16, b_col, out_dtype):
    c_in, n = x_fm.shape
    c_out = w_bf16.shape[0]
    tn = _pick_tile(n, 1024)
    return pl.pallas_call(
        _linear_kernel,
        out_shape=jax.ShapeDtypeStruct((c_out, n), out_dtype),
        grid_spec=pltpu.PrefetchScalarGridSpec(
            num_scalar_prefetch=0,
            grid=(n // tn,),
            in_specs=[pl.BlockSpec((c_out, c_in), lambda t: (0, 0)),
                      pl.BlockSpec((c_in, tn), lambda t: (0, t)),
                      pl.BlockSpec((c_out, 1), lambda t: (0, 0))],
            out_specs=pl.BlockSpec((c_out, tn), lambda t: (0, t)),
        ),
        compiler_params=pltpu.CompilerParams(dimension_semantics=("parallel",)),
    )(w_bf16, x_fm, b_col)


# ---------------------------------------------------------------------------
# Edge-statistics kernel (feature-major, tiled over edge columns):
#   single-pass sum / sumsq of (xs - xd)^2  ->  mean / std / skew / kurtosis
#   -> nan->0, tanh, F.normalize  ->  att[C, 2] = [S | 1] @ U^T
# ---------------------------------------------------------------------------
def _edge_stats_kernel(xs_ref, xd_ref, ut_ref, att_ref, sum_sc, sq_sc, *, num_edges):
    t = pl.program_id(0)

    @pl.when(t == 0)
    def _():
        sum_sc[...] = jnp.zeros_like(sum_sc)
        sq_sc[...] = jnp.zeros_like(sq_sc)

    diff = xs_ref[...].astype(jnp.float32) - xd_ref[...].astype(jnp.float32)
    d = diff * diff                                         # [C, TE]; zero for pad cols
    sum_sc[...] += jnp.sum(d, axis=1, keepdims=True)
    sq_sc[...] += jnp.sum(d * d, axis=1, keepdims=True)

    @pl.when(t == pl.num_programs(0) - 1)
    def _():
        e = float(num_edges)
        m1 = sum_sc[...] / e                                # mean           [C, 1]
        var = (sq_sc[...] - e * m1 * m1) / (e - 1.0)        # unbiased (torch.std)
        std = jnp.sqrt(jnp.maximum(var, 0.0))
        m2 = std + 1e-5
        r = m1 / m2
        k3 = r * r * r                                      # calc_skew
        k4 = k3 * r                                         # calc_kurtosis
        S = jnp.concatenate([m1, std, k3, k4], axis=1)      # [C, 4]
        S = jnp.where(jnp.isnan(S), 0.0, S)
        S = jnp.tanh(S)
        nrm = jnp.sqrt(jnp.sum(S * S, axis=0, keepdims=True))
        S = S / jnp.maximum(nrm, 1e-12)                     # F.normalize(., dim=1).T
        ones = jnp.ones((S.shape[0], 1), jnp.float32)
        S_aug = jnp.concatenate([S, ones], axis=1)          # [C, 5] (bias column)
        # columns: 0 -> att_l (src), 1 -> att_r (dst)
        att_ref[...] = jnp.dot(S_aug, ut_ref[...], preferred_element_type=jnp.float32)


def edge_stats_pallas(x_fm, src, dst, ut):
    c, _ = x_fm.shape
    e = src.shape[0]
    # TODO(synk): fuse this gather via scalar-prefetched indices inside the kernel.
    xs = x_fm[:, src]
    xd = x_fm[:, dst]
    te = 2048 if e > 2048 else _round_up(e, 128)
    e_pad = _round_up(e, te)
    if e_pad != e:
        xs = jnp.pad(xs, ((0, 0), (0, e_pad - e)))
        xd = jnp.pad(xd, ((0, 0), (0, e_pad - e)))
    kern = functools.partial(_edge_stats_kernel, num_edges=e)
    return pl.pallas_call(
        kern,
        out_shape=jax.ShapeDtypeStruct((c, 2), jnp.float32),
        grid_spec=pltpu.PrefetchScalarGridSpec(
            num_scalar_prefetch=0,
            grid=(e_pad // te,),
            in_specs=[pl.BlockSpec((c, te), lambda t: (0, t)),
                      pl.BlockSpec((c, te), lambda t: (0, t)),
                      pl.BlockSpec(ut.shape, lambda t: (0, 0))],
            out_specs=pl.BlockSpec((c, 2), lambda t: (0, 0)),
            scratch_shapes=[pltpu.VMEM((c, 1), jnp.float32),
                            pltpu.VMEM((c, 1), jnp.float32)],
        ),
        compiler_params=pltpu.CompilerParams(dimension_semantics=("arbitrary",)),
    )(xs, xd, ut)


# ---------------------------------------------------------------------------
# SPAConv attention kernel — flash-style masked segment softmax + aggregation,
# transposed (lane-dense) layout:
#   s^T[j, i] = leaky_relu(asrc[j] + adst[i]) * 0.1    (edge j -> i)
#   attn = softmax over j restricted to adj^T[j, i] > 0
#   out^T[C, i] = x_src[C, :] @ attn^T[:, i] + bias
# ---------------------------------------------------------------------------
def _spa_attn_kernel(xd_ref, xs_ref, adjt_ref, att_ref, bias_ref, o_ref,
                     m_sc, l_sc, adst_sc, acc_sc, *, negative_slope, apply_relu):
    j = pl.program_id(1)
    att_bf = att_ref[...].astype(jnp.bfloat16)              # [C, 2]

    @pl.when(j == 0)
    def _():
        m_sc[...] = jnp.full_like(m_sc, NEG_INF)
        l_sc[...] = jnp.zeros_like(l_sc)
        acc_sc[...] = jnp.zeros_like(acc_sc)
        # adst[i] = sum_c x_dst[c, i] * att_r[c]   (constant across the j loop)
        adst_sc[...] = lax.dot_general(
            att_bf[:, 1:2], xd_ref[...].astype(jnp.bfloat16),
            (((0,), (0,)), ((), ())), preferred_element_type=jnp.float32)   # [1, TM]

    xs_bf = xs_ref[...].astype(jnp.bfloat16)                 # [C, TN], hoisted & reused
    # asrc[j'] = sum_c x_src[c, j'] * att_l[c]  -> column [TN, 1]
    a_src = lax.dot_general(
        xs_bf, att_bf[:, 0:1], (((0,), (0,)), ((), ())),
        preferred_element_type=jnp.float32)

    s = adst_sc[...] + a_src                                 # [TN, TM] f32
    s = jnp.where(s > 0.0, s, negative_slope * s) * 0.1      # leaky_relu * 0.1
    s = jnp.where(adjt_ref[...] > 0, s, NEG_INF)             # single mask select

    m_prev = m_sc[...]                                       # [1, TM]
    m_new = jnp.maximum(m_prev, jnp.max(s, axis=0, keepdims=True))
    scale = jnp.exp(m_prev - m_new)                          # 0 kills all-masked prefix
    p = jnp.exp(s - m_new)                                   # masked entries underflow to 0
    l_sc[...] = scale * l_sc[...] + jnp.sum(p, axis=0, keepdims=True)
    acc_sc[...] = scale * acc_sc[...] + jnp.dot(
        xs_bf, p.astype(jnp.bfloat16), preferred_element_type=jnp.float32)  # [C, TM]
    m_sc[...] = m_new

    @pl.when(j == pl.num_programs(1) - 1)
    def _():
        l = l_sc[...]
        inv = pl.reciprocal(jnp.where(l > 0.0, l, 1.0), approx=True)
        out = acc_sc[...] * inv + bias_ref[...]
        if apply_relu:
            out = jnp.maximum(out, 0.0)
        o_ref[...] = out.astype(o_ref.dtype)


def spa_attn_pallas(x_fm, adjt, att, bias_col, apply_relu):
    c, n = x_fm.shape                                        # n is pre-padded to 128k
    if n <= 128:
        tm = n
    else:
        tm = _pick_tile(n, min(512, n // 2))                 # >=2 dst tiles (megacore)
    tn = _pick_tile(n, 1024)
    kern = functools.partial(_spa_attn_kernel, negative_slope=0.2,
                             apply_relu=apply_relu)
    return pl.pallas_call(
        kern,
        out_shape=jax.ShapeDtypeStruct((c, n), jnp.bfloat16),
        grid_spec=pltpu.PrefetchScalarGridSpec(
            num_scalar_prefetch=0,
            grid=(n // tm, n // tn),
            in_specs=[pl.BlockSpec((c, tm), lambda i, j: (0, i)),    # x (dst cols)
                      pl.BlockSpec((c, tn), lambda i, j: (0, j)),    # x (src cols)
                      pl.BlockSpec((tn, tm), lambda i, j: (j, i)),   # adj^T tile (int8)
                      pl.BlockSpec((c, 2), lambda i, j: (0, 0)),     # att_l / att_r
                      pl.BlockSpec((c, 1), lambda i, j: (0, 0))],    # bias column
            out_specs=pl.BlockSpec((c, tm), lambda i, j: (0, i)),
            scratch_shapes=[pltpu.VMEM((1, tm), jnp.float32),        # running max
                            pltpu.VMEM((1, tm), jnp.float32),        # running denom
                            pltpu.VMEM((1, tm), jnp.float32),        # alpha_dst row
                            pltpu.VMEM((c, tm), jnp.float32)],       # accumulator
        ),
        compiler_params=pltpu.CompilerParams(
            dimension_semantics=("parallel", "arbitrary")),
    )(x_fm, x_fm, adjt, att, bias_col)


# ---------------------------------------------------------------------------
# Glue: adjacency, parameters, full SPA forward
# ---------------------------------------------------------------------------
def build_adj_t(edge_index, num_nodes, n_pad):
    # remove_self_loops then add_self_loops -> transposed dense int8 mask adj^T[src, dst]
    # built directly in int8 (no f32 n^2 intermediate).
    src, dst = edge_index[0], edge_index[1]
    vals = (src != dst).astype(jnp.int8)
    adjt = jnp.zeros((n_pad, n_pad), jnp.int8).at[src, dst].max(vals)
    diag = jnp.arange(num_nodes)
    adjt = adjt.at[diag, diag].set(jnp.int8(1))
    return adjt


def xavier_uniform(key, shape, gain=1.414):
    fan_out, fan_in = shape
    a = gain * math.sqrt(6.0 / (fan_in + fan_out))
    return jax.random.uniform(key, shape, jnp.float32, -a, a)


def init_params(key, in_ch, hid, out_ch, num_layers, k=4, hidden_size=16):
    fc_dims = [(hid, in_ch)] + [(hid, hid)] * (num_layers - 1) + [(out_ch, hid)]
    raw = {"fc_w": [], "fc_b": [], "gat": []}
    for d in fc_dims:
        key, kk = jax.random.split(key)
        raw["fc_w"].append(xavier_uniform(kk, d))
        raw["fc_b"].append(jnp.zeros((d[0],), jnp.float32))
    for _ in range(num_layers + 1):
        key, k1, k2, k3 = jax.random.split(key, 4)
        raw["gat"].append({
            "w_src": xavier_uniform(k1, (hidden_size, k)),
            "b_src": jnp.zeros((1, hidden_size), jnp.float32),
            "w_dst": xavier_uniform(k2, (hidden_size, k)),
            "b_dst": jnp.zeros((1, hidden_size), jnp.float32),
            "q": jax.random.normal(k3, (1, hidden_size), jnp.float32),
            "bias": jnp.zeros((1, hid), jnp.float32),
        })
    return raw


def prepare_params(raw):
    # Hoist parameter-only work out of the kernels: W in bf16 (feature-major),
    # bias columns, and U^T where U = [[q@W_src, q.b_src], [q@W_dst, q.b_dst]].
    prep = {"fc_w": [], "fc_b": [], "gat_ut": [], "gat_bias": []}
    for w, b in zip(raw["fc_w"], raw["fc_b"]):
        prep["fc_w"].append(w.astype(jnp.bfloat16))                   # [C_out, C_in]
        prep["fc_b"].append(b.reshape(-1, 1).astype(jnp.float32))     # [C_out, 1]
    for g in raw["gat"]:
        q = g["q"]                                                    # [1, H]
        u_src = jnp.dot(q, g["w_src"])                                # [1, k]
        u_dst = jnp.dot(q, g["w_dst"])                                # [1, k]
        c_src = jnp.sum(q * g["b_src"]).reshape(1, 1)
        c_dst = jnp.sum(q * g["b_dst"]).reshape(1, 1)
        u = jnp.concatenate(
            [jnp.concatenate([u_src, c_src], axis=1),
             jnp.concatenate([u_dst, c_dst], axis=1)], axis=0)        # [2, k+1]
        prep["gat_ut"].append(u.T.astype(jnp.float32))                # [k+1, 2]
        prep["gat_bias"].append(g["bias"].reshape(-1, 1).astype(jnp.float32))
    return prep


def spa_forward(x, edge_index, params, num_layers):
    n = x.shape[0]
    n_pad = _round_up(n, 128)                     # lane-align the node axis
    src, dst = edge_index[0], edge_index[1]
    adjt = build_adj_t(edge_index, n, n_pad)
    # feature-major activations: [C, N_pad]
    x_fm = jnp.pad(x.T, ((0, 0), (0, n_pad - n)))
    # initial dropout(p=0) == identity (inference)
    for i in range(num_layers - 1):
        x_fm = linear_pallas(x_fm, params["fc_w"][i], params["fc_b"][i], jnp.bfloat16)
        att = edge_stats_pallas(x_fm, src, dst, params["gat_ut"][i])
        x_fm = spa_attn_pallas(x_fm, adjt, att, params["gat_bias"][i], apply_relu=True)
        # relu fused into the attention kernel; dropout(p=0) == identity
    att = edge_stats_pallas(x_fm, src, dst, params["gat_ut"][-1])
    x_fm = spa_attn_pallas(x_fm, adjt, att, params["gat_bias"][-1], apply_relu=False)
    x_fm = linear_pallas(x_fm, params["fc_w"][-1], params["fc_b"][-1], jnp.float32)
    return x_fm[:, :n].T


if __name__ == "__main__":
    N, IN, HID, OUT, NUM_LAYERS = 16, 8, 32, 4, 2

    key = jax.random.PRNGKey(0)
    kx, kp = jax.random.split(key)
    x = jax.random.normal(kx, (N, IN), jnp.float32)

    # deterministic edge list (no duplicate edges), plus a few explicit self loops
    # (removed and re-added inside the conv, matching PyG behavior).
    src_list, dst_list = [], []
    for off in (1, 2, 3, 5):
        for i in range(N):
            src_list.append(i)
            dst_list.append((i + off) % N)
    for i in range(0, N, 4):
        src_list.append(i)
        dst_list.append(i)
    edge_index = jnp.array([src_list, dst_list], dtype=jnp.int32)

    raw_params = init_params(kp, IN, HID, OUT, NUM_LAYERS)
    params = prepare_params(raw_params)

    out = spa_forward(x, edge_index, params, NUM_LAYERS)
    out = jax.block_until_ready(out)

    assert out.shape == (N, OUT)
    assert bool(jnp.all(jnp.isfinite(out)))
    print("KERNEL_OK")
</pallas_src>

<mosaic_0001>
module attributes {stable_mosaic.version = 11 : i64} {
  func.func @_linear_kernel(%arg0: i32, %arg1: memref<32x8xbf16, #tpu.memory_space<vmem>>, %arg2: memref<8x128xf32, #tpu.memory_space<vmem>>, %arg3: memref<32x1xf32, #tpu.memory_space<vmem>>, %arg4: memref<32x128xbf16, #tpu.memory_space<vmem>>) attributes {dimension_semantics = [#tpu.dimension_semantics<parallel>], iteration_bounds = array<i64: 1>, scalar_prefetch = 0 : i64, scratch_operands = 0 : i64, tpu.core_type = #tpu.core_type<tc>, window_params = [{pipeline_mode = #tpu.pipeline_mode<synchronous>, transform_indices = @transform_0, window_bounds = array<i64: 32, 8>}, {transform_indices = @transform_1, window_bounds = array<i64: 8, 128>}, {pipeline_mode = #tpu.pipeline_mode<synchronous>, transform_indices = @transform_2, window_bounds = array<i64: 32, 1>}, {transform_indices = @transform_3, window_bounds = array<i64: 32, 128>}]} {
    %c0 = arith.constant 0 : index
    %c0_0 = arith.constant 0 : index
    %0 = vector.load %arg1[%c0, %c0_0] : memref<32x8xbf16, #tpu.memory_space<vmem>>, vector<32x8xbf16>
    %c0_1 = arith.constant 0 : index
    %c0_2 = arith.constant 0 : index
    %1 = vector.load %arg2[%c0_1, %c0_2] : memref<8x128xf32, #tpu.memory_space<vmem>>, vector<8x128xf32>
    %2 = arith.truncf %1 : vector<8x128xf32> to vector<8x128xbf16>
    %cst = arith.constant dense<0.000000e+00> : vector<32x128xf32>
    %3 = tpu.matmul %0, %2, %cst {dimension_numbers = #tpu.dot_dimension_numbers<[1], [0], [0], [1], [0, 0, 1, 1], [], []>} : vector<32x8xbf16>, vector<8x128xbf16>, vector<32x128xf32> -> vector<32x128xf32>
    %c0_3 = arith.constant 0 : index
    %c0_4 = arith.constant 0 : index
    %4 = vector.load %arg3[%c0_3, %c0_4] : memref<32x1xf32, #tpu.memory_space<vmem>>, vector<32x1xf32>
    %5 = vector.broadcast %4 : vector<32x1xf32> to vector<32x128xf32>
    %6 = arith.addf %3, %5 : vector<32x128xf32>
    %7 = arith.truncf %6 : vector<32x128xf32> to vector<32x128xbf16>
    %c0_5 = arith.constant 0 : index
    %c0_6 = arith.constant 0 : index
    %8 = vector.load %arg4[%c0_5, %c0_6] : memref<32x128xbf16, #tpu.memory_space<vmem>>, vector<32x128xbf16>
    tpu.vector_store %arg4[%c0_5, %c0_6], %7 {strides = array<i32>} : memref<32x128xbf16, #tpu.memory_space<vmem>>, vector<32x128xbf16>,
    return
  }
  func.func @transform_0(%arg0: i32) -> (i32, i32) {
    %c0_i32 = arith.constant 0 : i32
    %c0_i32_0 = arith.constant 0 : i32
    %c0_i32_1 = arith.constant 0 : i32
    return %c0_i32, %c0_i32_0 : i32, i32
  }
  func.func @transform_1(%arg0: i32) -> (i32, i32) {
    %c0_i32 = arith.constant 0 : i32
    %c0_i32_0 = arith.constant 0 : i32
    return %c0_i32, %arg0 : i32, i32
  }
  func.func @transform_2(%arg0: i32) -> (i32, i32) {
    %c0_i32 = arith.constant 0 : i32
    %c0_i32_0 = arith.constant 0 : i32
    %c0_i32_1 = arith.constant 0 : i32
    return %c0_i32, %c0_i32_0 : i32, i32
  }
  func.func @transform_3(%arg0: i32) -> (i32, i32) {
    %c0_i32 = arith.constant 0 : i32
    %c0_i32_0 = arith.constant 0 : i32
    return %c0_i32, %arg0 : i32, i32
  }
}

</mosaic_0001>

<llo_original>
// kernel: tpu_custom_call.1
$region0: #{tpu_custom_call.1}
  #allocation0 [shape = 'u32[]', space=smem, size = 0x4, offset = 0x4, fixed_abs, tag = 'smem constant byte address 0x4 - core index']
  #allocation1 [shape = 'u32[144,128]{1,0:T(1,128)}', space=vmem, size = 0x12000, scoped, tag = 'internal scratch']
  %s0 = inlined_call_operand.vmem [shape: bf16[32,8], index: 0, kind: input, shape index: {}]
  %s1 = inlined_call_operand.vmem [shape: f32[8,128], index: 1, kind: input, shape index: {}]
  %s2 = inlined_call_operand.vmem [shape: f32[32,1], index: 2, kind: input, shape index: {}]
  %s3 = inlined_call_operand.hbm [shape: bf16[32,128], index: 3, kind: output, shape index: {}]
  %s4 = sld [smem:[#allocation0]]
  $region22: #{tpu_custom_call.1} parent=0
    _
  %s6 = ssub.s32 1, %s4
  %s7 = scalar_select 0, %s6, %s4
  $region1: #{tpu_custom_call.1} parent=0
    #allocation2 [shape = 'u8[8192]{0}', space=vmem, size = 0x2000, scoped, tag = 'output window, operand 0, single buffered']
    #allocation3 [shape = 's32[1]{0}', space=sflag, size = 0x4, scoped, tag = 'scoped memory for tpu_custom_call.1']
    %8 = vsyncpa [#allocation3], 0
    // Predicated region
    $region2: #{tpu_custom_call.1} parent=1 // pred_check
      _
    $region3: #{tpu_custom_call.1} parent=1 // pred_check_branch
      %10 = sbr.rel (0) target = $region5
    $region4: #{tpu_custom_call.1} parent=1 // pred_region
      _
    $region5: #{tpu_custom_call.1} parent=1 // pred_fallthru
      _
    // Predicated region
    $region6: #{tpu_custom_call.1} parent=1 // pred_check
      _
    $region7: #{tpu_custom_call.1} parent=1 // pred_check_branch
      %12 = sbr.rel (0) target = $region9
    $region8: #{tpu_custom_call.1} parent=1 // pred_region
      _
    $region9: #{tpu_custom_call.1} parent=1 // pred_fallthru
      _
    // Predicated region
    $region10: #{tpu_custom_call.1} parent=1 // pred_check
      _
    $region11: #{tpu_custom_call.1} parent=1 // pred_check_branch
      %14 = sbr.rel (0) target = $region13
    $region12: #{tpu_custom_call.1} parent=1 // pred_region
      _
    $region13: #{tpu_custom_call.1} parent=1 // pred_fallthru
      _
    %v16 = vld [vmem:[%s0] sm:$0xf]
    %v17 = vld [vmem:[%s0 + $0x4] sm:$0xf]
    %v18 = vld [vmem:[%s0 + $0x8] sm:$0xf]
    %v19 = vld [vmem:[%s0 + $0xc] sm:$0xf]
    %v20 = vld [vmem:[%s1] sm:$0xff]
    %v21 = vpack.c.bf16 %v20, %v20
    %v22 = vld [vmem:[%s2] sm:$0xff]
    %v23 = vld [vmem:[%s2 + $0x8] sm:$0xff]
    %v24 = vld [vmem:[%s2 + $0x10] sm:$0xff]
    %v25 = vld [vmem:[%s2 + $0x18] sm:$0xff]
    %27 = vset.pattern.permute.xlu0 0
    %28 = vperm.xlu0 %27, %v22
    %v29 = vpop.permute.xlu0 %28
    %32 = vset.pattern.permute.xlu0 0
    %33 = vperm.xlu0 %32, %v23
    %v34 = vpop.permute.xlu0 %33
    %37 = vset.pattern.permute.xlu0 0
    %38 = vperm.xlu0 %37, %v24
    %v39 = vpop.permute.xlu0 %38
    %42 = vset.pattern.permute.xlu0 0
    %43 = vperm.xlu0 %42, %v25
    %v44 = vpop.permute.xlu0 %43
    %v50 = vunpack.c.l.b16 %v16
    %v51 = vunpack.c.l.b16 %v17
    %v52 = vunpack.c.l.b16 %v18
    %v53 = vunpack.c.l.b16 %v19
    %v54 = vpack.c.b16 %v51, %v50
    %v55 = vpack.c.b16 %v53, %v52
    %vm56 = vcmask 64512
    %v58 = vsel %vm56, %v54, 0
    %v61 = vsel %vm56, %v55, 0
    %vm63 = vcmask 1043456
    %v65 = vsel %vm63, %v21, 0
    %67 = vmatprep.subr.bf16.mxu0 0
    %68 = vmatpush1.bf16.msra.mxu0 0
    %69 = vmatprep.subr.bf16.mxu0 0
    %70 = vmatpush1.bf16.msra.mxu0 0
    %71 = vmatprep.subr.bf16.mxu0 0
    %72 = vmatpush1.bf16.msra.mxu0 0
    %73 = vmatprep.subr.bf16.mxu0 0
    %74 = vmatpush1.bf16.msra.mxu0 0
    %75 = vmatprep.subr.bf16.mxu0 0
    %76 = vmatpush1.bf16.msra.mxu0 0
    %77 = vmatprep.subr.bf16.mxu0 0
    %78 = vmatpush1.bf16.msra.mxu0 0
    %79 = vmatprep.subr.bf16.mxu0 0
    %80 = vmatpush1.bf16.msra.mxu0 0
    %81 = vmatprep.subr.bf16.mxu0 0
    %82 = vmatpush1.bf16.msra.mxu0 %v65
    %83 = vmatprep.subr.bf16.mxu0 0
    %84 = vmatpush2.bf16.msra.mxu0 0
    %85 = vmatprep.subr.bf16.mxu0 0
    %86 = vmatpush2.bf16.msra.mxu0 0
    %87 = vmatprep.subr.bf16.mxu0 0
    %88 = vmatpush2.bf16.msra.mxu0 0
    %89 = vmatprep.subr.bf16.mxu0 0
    %90 = vmatpush2.bf16.msra.mxu0 0
    %91 = vmatprep.subr.bf16.mxu0 0
    %92 = vmatpush2.bf16.msra.mxu0 0
    %93 = vmatprep.subr.bf16.mxu0 0
    %94 = vmatpush2.bf16.msra.mxu0 0
    %95 = vmatprep.subr.bf16.mxu0 0
    %96 = vmatpush2.bf16.msra.mxu0 0
    %97 = vmatprep.subr.bf16.mxu0 0
    %98 = vmatpush2.bf16.msra.mxu0 0
    %99 = vmatprep.mubr.bf16.mxu0 0
    %100 = vmatmul.mubr.bf16.gmra.mxu0 %v58
    %v101 = vpop.f32.mrf.mxu0
    %v102 = vadd.f32 %v29, %v101
    %v103 = vpop.f32.mrf.mxu0
    %v104 = vpop.f32.mrf.mxu0
    %v105 = vadd.f32 %v34, %v104
    %v106 = vpop.f32.mrf.mxu0
    %107 = vmatprep.mubr.bf16.mxu0 0
    %108 = vmatmul.mubr.bf16.gmra.mxu0 %v61
    %v109 = vpop.f32.mrf.mxu0
    %v110 = vadd.f32 %v39, %v109
    %v111 = vpop.f32.mrf.mxu0
    %v112 = vpop.f32.mrf.mxu0
    %v113 = vadd.f32 %v44, %v112
    %v114 = vpop.f32.mrf.mxu0
    %115 = vdwg.mxu0
    %v116 = vpack.c.bf16 %v105, %v102
    %v117 = vpack.c.bf16 %v113, %v110
    %v120 = vunpack.c.l.b16 %v116
    %v121 = vunpack.c.h.b16 %v116
    %v122 = vunpack.c.l.b16 %v117
    %v123 = vunpack.c.h.b16 %v117
    %v124 = vpack.c.b16 %v120, %v120
    %v125 = vpack.c.b16 %v121, %v121
    %v126 = vpack.c.b16 %v122, %v122
    %v127 = vpack.c.b16 %v123, %v123
    %132 = vst [vmem:[#allocation2] sm:$0xf] %v124
    %133 = vst [vmem:[#allocation2 + $0x4] sm:$0xf] %v125
    %134 = vst [vmem:[#allocation2 + $0x8] sm:$0xf] %v126
    %135 = vst [vmem:[#allocation2 + $0xc] sm:$0xf] %v127
    // Predicated region
    $region14: #{tpu_custom_call.1} parent=1 // pred_check
      _
    $region15: #{tpu_custom_call.1} parent=1 // pred_check_branch
      %137 = sbr.rel (0) target = $region17
    $region16: #{tpu_custom_call.1} parent=1 // pred_region
      %s139 = ssub.s32 256, 256
      %140 = vsyncadd [#allocation3], %s139
      %s141 = sshll.u32 [#allocation2], 4
      %s142 = int_to_ptr.vmem [resolvable:$true] %s141
      %147 = dma.vmem_to_hbm [thread:$0]  %s142, 256, %s3, [#allocation3], 64, 64, 4
    $region17: #{tpu_custom_call.1} parent=1 // pred_fallthru
      _
    // Predicated region
    $region18: #{tpu_custom_call.1} parent=1 // pred_check
      _
    $region19: #{tpu_custom_call.1} parent=1 // pred_check_branch
      %149 = sbr.rel (0) target = $region21
    $region20: #{tpu_custom_call.1} parent=1 // pred_region
      %150 = dma.done [#allocation3], 256
    $region21: #{tpu_custom_call.1} parent=1 // pred_fallthru
      _
    %151 = vsyncpa [#allocation3], 1

</llo_original>
